<compile_context>
chip_gen: v5e
topology: v5e:2x2
jax: 0.10.0
libtpu: 0.0.40
codegen_flags: <defaults>
</compile_context>

<pallas_src>
import functools

import jax
import jax.numpy as jnp
from jax import lax
from jax.experimental import pallas as pl
from jax.experimental.pallas import tpu as pltpu


def _round_up(x, m):
    return (x + m - 1) // m * m


# ------------------------------ fused kernel --------------------------------

def _dsc_kernel(x_ref, dww_ref, dwb_ref, pww_ref, pwb_ref, o_ref, *,
                kh, kw, activation):
    # x_ref  : (1, TH+kh-1, Wp, Cp)  f32  -- halo'd input row window
    # dww_ref: (kh, kw, Cp)          f32  -- depthwise weight (resident)
    # dwb_ref: (1, Cp)               f32  -- depthwise bias
    # pww_ref: (Cp, Cop)             bf16 -- pointwise weight (MXU operand, resident)
    # pwb_ref: (1, Cop)              f32  -- pointwise bias
    # o_ref  : (1, TH, Wo, Cop)      f32
    x = x_ref[0]                       # (TH+kh-1, Wp, Cp)
    w = dww_ref[...]                   # (kh, kw, Cp)
    TH, Wo, Cop = o_ref.shape[1], o_ref.shape[2], o_ref.shape[3]
    Cp = x.shape[-1]

    # Depthwise conv: accumulate the kh*kw taps in f32 on the VPU (no im2col).
    acc = jnp.zeros((TH, Wo, Cp), jnp.float32)
    for dy in range(kh):
        for dx in range(kw):
            acc = acc + x[dy:dy + TH, dx:dx + Wo, :] * w[dy, dx, :]
    acc = acc + dwb_ref[0, :]

    if activation == "relu":
        acc = jnp.maximum(acc, 0.0)

    # Pointwise 1x1 conv == lane-dense matmul on the MXU (bf16 in, f32 accumulate).
    y = jnp.dot(acc.reshape(TH * Wo, Cp).astype(jnp.bfloat16), pww_ref[...],
                preferred_element_type=jnp.float32)
    y = y + pwb_ref[0, :]
    o_ref[...] = y.reshape(1, TH, Wo, Cop)


# --------------------------------- wrapper ----------------------------------

def depth_sep_conv2d(x_nchw, depth_w, depth_b, point_w, point_b, *,
                     activation=None, padding=True, row_tile=8):
    """Fused DepthSepConv2D forward.

    x_nchw : (N, Cin, H, W)      PyTorch NCHW input
    depth_w: (Cin, 1, kh, kw)    nn.Conv2d(groups=Cin) weight
    depth_b: (Cin,)
    point_w: (Cout, Cin, 1, 1)   1x1 conv weight
    point_b: (Cout,)
    Returns (N, Cout, Ho, Wo) in NCHW, matching the PyTorch module.
    """
    N, Cin, H, W = x_nchw.shape
    Cout = point_w.shape[0]
    kh, kw = int(depth_w.shape[2]), int(depth_w.shape[3])
    assert kh % 2 == 1 and kw % 2 == 1, "even kernel sizes not supported"

    # ---- layout: NCHW -> NHWC, zero-pad channels to the 128-lane width ------
    Cp = _round_up(max(Cin, 1), 128)
    Cop = _round_up(max(Cout, 1), 128)
    x = jnp.transpose(x_nchw, (0, 2, 3, 1)).astype(jnp.float32)          # (N,H,W,Cin)
    x = jnp.pad(x, ((0, 0), (0, 0), (0, 0), (0, Cp - Cin)))

    dw_w = jnp.transpose(depth_w[:, 0, :, :], (1, 2, 0)).astype(jnp.float32)  # (kh,kw,Cin)
    dw_w = jnp.pad(dw_w, ((0, 0), (0, 0), (0, Cp - Cin)))
    dw_b = jnp.pad(depth_b.astype(jnp.float32), (0, Cp - Cin)).reshape(1, Cp)
    pw_w = jnp.pad(point_w[:, :, 0, 0].T.astype(jnp.float32),
                   ((0, Cp - Cin), (0, Cop - Cout))).astype(jnp.bfloat16)      # (Cp,Cop)
    pw_b = jnp.pad(point_b.astype(jnp.float32), (0, Cop - Cout)).reshape(1, Cop)

    # ---- spatial padding (padding=True, odd kernel -> "same") ---------------
    pad_h, pad_w = (kh // 2, kw // 2) if padding else (0, 0)
    xp = jnp.pad(x, ((0, 0), (pad_h, pad_h), (pad_w, pad_w), (0, 0)))
    Hp, Wp = H + 2 * pad_h, W + 2 * pad_w
    Ho, Wo = Hp - kh + 1, Wp - kw + 1

    # ---- output-row tiling with an explicit (kh-1)-row halo -----------------
    TH = min(row_tile, Ho)
    n_tiles = pl.cdiv(Ho, TH)
    Ho_t = n_tiles * TH
    THI = TH + kh - 1
    xp = jnp.pad(xp, ((0, 0), (0, Ho_t + kh - 1 - Hp), (0, 0), (0, 0)))
    # Stack overlapping row windows: only ~(TH+kh-1)/TH duplication (no 9x im2col).
    xs = jnp.stack([xp[:, t * TH:t * TH + THI] for t in range(n_tiles)], axis=1)
    xs = xs.reshape(N * n_tiles, THI, Wp, Cp)

    grid = (N * n_tiles,)
    kernel = functools.partial(_dsc_kernel, kh=kh, kw=kw, activation=activation)
    out = pl.pallas_call(
        kernel,
        grid=grid,
        in_specs=[
            pl.BlockSpec((1, THI, Wp, Cp), lambda i: (i, 0, 0, 0)),
            pl.BlockSpec((kh, kw, Cp), lambda i: (0, 0, 0)),   # resident weights
            pl.BlockSpec((1, Cp), lambda i: (0, 0)),
            pl.BlockSpec((Cp, Cop), lambda i: (0, 0)),
            pl.BlockSpec((1, Cop), lambda i: (0, 0)),
        ],
        out_specs=pl.BlockSpec((1, TH, Wo, Cop), lambda i: (i, 0, 0, 0)),
        out_shape=jax.ShapeDtypeStruct((N * n_tiles, TH, Wo, Cop), jnp.float32),
        compiler_params=pltpu.CompilerParams(
            dimension_semantics=("parallel",),          # shards across TCs on v7x
            vmem_limit_bytes=32 * 1024 * 1024,          # safe on v5e/v6e/v7x
        ),
    )(xs, dw_w, dw_b, pw_w, pw_b)

    out = out.reshape(N, Ho_t, Wo, Cop)[:, :Ho, :, :Cout]                # un-pad
    return jnp.transpose(out, (0, 3, 1, 2))                              # NCHW


# ------------------------- pure-XLA reference (check) -----------------------

def _reference(x_nchw, depth_w, depth_b, point_w, point_b, *, activation, padding):
    # Same math as the kernel (f32 depthwise, bf16 pointwise with f32 accumulate).
    N, Cin, H, W = x_nchw.shape
    kh, kw = depth_w.shape[2], depth_w.shape[3]
    pad = ((kh // 2, kh // 2), (kw // 2, kw // 2)) if padding else ((0, 0), (0, 0))
    y = lax.conv_general_dilated(
        x_nchw.astype(jnp.float32), depth_w.astype(jnp.float32),
        window_strides=(1, 1), padding=pad,
        dimension_numbers=("NCHW", "OIHW", "NCHW"),
        feature_group_count=Cin)
    y = y + depth_b.reshape(1, Cin, 1, 1)
    if activation == "relu":
        y = jnp.maximum(y, 0.0)
    yb = jnp.transpose(y, (0, 2, 3, 1)).astype(jnp.bfloat16)
    wb = point_w[:, :, 0, 0].T.astype(jnp.bfloat16)
    z = jnp.dot(yb, wb, preferred_element_type=jnp.float32) + point_b
    return jnp.transpose(z, (0, 3, 1, 2))


# ----------------------------------- main ------------------------------------

if __name__ == "__main__":
    key = jax.random.PRNGKey(0)
    k1, k2, k3, k4, k5 = jax.random.split(key, 5)
    N, Cin, H, W = 2, 4, 16, 16
    Cout, kh, kw = 8, 3, 3

    x = jax.random.normal(k1, (N, Cin, H, W), jnp.float32)
    depth_w = jax.random.normal(k2, (Cin, 1, kh, kw), jnp.float32) / (kh * kw) ** 0.5
    depth_b = jax.random.normal(k3, (Cin,), jnp.float32) * 0.1
    point_w = jax.random.normal(k4, (Cout, Cin, 1, 1), jnp.float32) / Cin ** 0.5
    point_b = jax.random.normal(k5, (Cout,), jnp.float32) * 0.1

    # DSC-block style usage: activation=ReLU between depthwise and pointwise.
    fwd_relu = jax.jit(functools.partial(depth_sep_conv2d,
                                         activation="relu", padding=True))
    out = jax.block_until_ready(fwd_relu(x, depth_w, depth_b, point_w, point_b))
    assert out.shape == (N, Cout, H, W), out.shape
    assert bool(jnp.all(jnp.isfinite(out)))
    ref = _reference(x, depth_w, depth_b, point_w, point_b,
                     activation="relu", padding=True)
    assert jnp.allclose(out, ref, rtol=1e-2, atol=1e-2), \
        float(jnp.max(jnp.abs(out - ref)))

    # Module default: activation=None.
    fwd_none = jax.jit(functools.partial(depth_sep_conv2d,
                                         activation=None, padding=True))
    out2 = jax.block_until_ready(fwd_none(x, depth_w, depth_b, point_w, point_b))
    ref2 = _reference(x, depth_w, depth_b, point_w, point_b,
                      activation=None, padding=True)
    assert out2.shape == (N, Cout, H, W)
    assert jnp.allclose(out2, ref2, rtol=1e-2, atol=1e-2), \
        float(jnp.max(jnp.abs(out2 - ref2)))

    print("KERNEL_OK")
</pallas_src>

<mosaic_0001>
module attributes {stable_mosaic.version = 11 : i64} {
  func.func @_dsc_kernel(%arg0: i32, %arg1: memref<1x10x18x128xf32, #tpu.memory_space<vmem>>, %arg2: memref<3x3x128xf32, #tpu.memory_space<vmem>>, %arg3: memref<1x128xf32, #tpu.memory_space<vmem>>, %arg4: memref<128x128xbf16, #tpu.memory_space<vmem>>, %arg5: memref<1x128xf32, #tpu.memory_space<vmem>>, %arg6: memref<1x8x16x128xf32, #tpu.memory_space<vmem>>) attributes {dimension_semantics = [#tpu.dimension_semantics<parallel>], iteration_bounds = array<i64: 4>, scalar_prefetch = 0 : i64, scratch_operands = 0 : i64, tpu.core_type = #tpu.core_type<tc>, window_params = [{transform_indices = @transform_0, window_bounds = array<i64: 1, 10, 18, 128>}, {pipeline_mode = #tpu.pipeline_mode<synchronous>, transform_indices = @transform_1, window_bounds = array<i64: 3, 3, 128>}, {pipeline_mode = #tpu.pipeline_mode<synchronous>, transform_indices = @transform_2, window_bounds = array<i64: 1, 128>}, {pipeline_mode = #tpu.pipeline_mode<synchronous>, transform_indices = @transform_3, window_bounds = array<i64: 128, 128>}, {pipeline_mode = #tpu.pipeline_mode<synchronous>, transform_indices = @transform_4, window_bounds = array<i64: 1, 128>}, {transform_indices = @transform_5, window_bounds = array<i64: 1, 8, 16, 128>}]} {
    %c0 = arith.constant 0 : index
    %c0_0 = arith.constant 0 : index
    %c0_1 = arith.constant 0 : index
    %c0_2 = arith.constant 0 : index
    %0 = vector.load %arg1[%c0, %c0_0, %c0_1, %c0_2] : memref<1x10x18x128xf32, #tpu.memory_space<vmem>>, vector<1x10x18x128xf32>
    %1 = vector.shape_cast %0 : vector<1x10x18x128xf32> to vector<10x18x128xf32>
    %c0_3 = arith.constant 0 : index
    %c0_4 = arith.constant 0 : index
    %c0_5 = arith.constant 0 : index
    %2 = vector.load %arg2[%c0_3, %c0_4, %c0_5] : memref<3x3x128xf32, #tpu.memory_space<vmem>>, vector<3x3x128xf32>
    %cst = arith.constant 0.000000e+00 : f32
    %3 = vector.broadcast %cst : f32 to vector<8x16x128xf32>
    %4 = vector.extract_strided_slice %1 {offsets = [0, 0, 0], sizes = [8, 16, 128], strides = [1, 1, 1]} : vector<10x18x128xf32> to vector<8x16x128xf32>
    %5 = vector.extract_strided_slice %2 {offsets = [0, 0, 0], sizes = [1, 1, 128], strides = [1, 1, 1]} : vector<3x3x128xf32> to vector<1x1x128xf32>
    %6 = vector.shape_cast %5 : vector<1x1x128xf32> to vector<128xf32>
    %7 = vector.shape_cast %6 : vector<128xf32> to vector<1x1x128xf32>
    %8 = vector.broadcast %7 : vector<1x1x128xf32> to vector<8x16x128xf32>
    %9 = arith.mulf %4, %8 : vector<8x16x128xf32>
    %10 = arith.addf %3, %9 : vector<8x16x128xf32>
    %11 = vector.extract_strided_slice %1 {offsets = [0, 1, 0], sizes = [8, 16, 128], strides = [1, 1, 1]} : vector<10x18x128xf32> to vector<8x16x128xf32>
    %12 = vector.extract_strided_slice %2 {offsets = [0, 1, 0], sizes = [1, 1, 128], strides = [1, 1, 1]} : vector<3x3x128xf32> to vector<1x1x128xf32>
    %13 = vector.shape_cast %12 : vector<1x1x128xf32> to vector<128xf32>
    %14 = vector.shape_cast %13 : vector<128xf32> to vector<1x1x128xf32>
    %15 = vector.broadcast %14 : vector<1x1x128xf32> to vector<8x16x128xf32>
    %16 = arith.mulf %11, %15 : vector<8x16x128xf32>
    %17 = arith.addf %10, %16 : vector<8x16x128xf32>
    %18 = vector.extract_strided_slice %1 {offsets = [0, 2, 0], sizes = [8, 16, 128], strides = [1, 1, 1]} : vector<10x18x128xf32> to vector<8x16x128xf32>
    %19 = vector.extract_strided_slice %2 {offsets = [0, 2, 0], sizes = [1, 1, 128], strides = [1, 1, 1]} : vector<3x3x128xf32> to vector<1x1x128xf32>
    %20 = vector.shape_cast %19 : vector<1x1x128xf32> to vector<128xf32>
    %21 = vector.shape_cast %20 : vector<128xf32> to vector<1x1x128xf32>
    %22 = vector.broadcast %21 : vector<1x1x128xf32> to vector<8x16x128xf32>
    %23 = arith.mulf %18, %22 : vector<8x16x128xf32>
    %24 = arith.addf %17, %23 : vector<8x16x128xf32>
    %25 = vector.extract_strided_slice %1 {offsets = [1, 0, 0], sizes = [8, 16, 128], strides = [1, 1, 1]} : vector<10x18x128xf32> to vector<8x16x128xf32>
    %26 = vector.extract_strided_slice %2 {offsets = [1, 0, 0], sizes = [1, 1, 128], strides = [1, 1, 1]} : vector<3x3x128xf32> to vector<1x1x128xf32>
    %27 = vector.shape_cast %26 : vector<1x1x128xf32> to vector<128xf32>
    %28 = vector.shape_cast %27 : vector<128xf32> to vector<1x1x128xf32>
    %29 = vector.broadcast %28 : vector<1x1x128xf32> to vector<8x16x128xf32>
    %30 = arith.mulf %25, %29 : vector<8x16x128xf32>
    %31 = arith.addf %24, %30 : vector<8x16x128xf32>
    %32 = vector.extract_strided_slice %1 {offsets = [1, 1, 0], sizes = [8, 16, 128], strides = [1, 1, 1]} : vector<10x18x128xf32> to vector<8x16x128xf32>
    %33 = vector.extract_strided_slice %2 {offsets = [1, 1, 0], sizes = [1, 1, 128], strides = [1, 1, 1]} : vector<3x3x128xf32> to vector<1x1x128xf32>
    %34 = vector.shape_cast %33 : vector<1x1x128xf32> to vector<128xf32>
    %35 = vector.shape_cast %34 : vector<128xf32> to vector<1x1x128xf32>
    %36 = vector.broadcast %35 : vector<1x1x128xf32> to vector<8x16x128xf32>
    %37 = arith.mulf %32, %36 : vector<8x16x128xf32>
    %38 = arith.addf %31, %37 : vector<8x16x128xf32>
    %39 = vector.extract_strided_slice %1 {offsets = [1, 2, 0], sizes = [8, 16, 128], strides = [1, 1, 1]} : vector<10x18x128xf32> to vector<8x16x128xf32>
    %40 = vector.extract_strided_slice %2 {offsets = [1, 2, 0], sizes = [1, 1, 128], strides = [1, 1, 1]} : vector<3x3x128xf32> to vector<1x1x128xf32>
    %41 = vector.shape_cast %40 : vector<1x1x128xf32> to vector<128xf32>
    %42 = vector.shape_cast %41 : vector<128xf32> to vector<1x1x128xf32>
    %43 = vector.broadcast %42 : vector<1x1x128xf32> to vector<8x16x128xf32>
    %44 = arith.mulf %39, %43 : vector<8x16x128xf32>
    %45 = arith.addf %38, %44 : vector<8x16x128xf32>
    %46 = vector.extract_strided_slice %1 {offsets = [2, 0, 0], sizes = [8, 16, 128], strides = [1, 1, 1]} : vector<10x18x128xf32> to vector<8x16x128xf32>
    %47 = vector.extract_strided_slice %2 {offsets = [2, 0, 0], sizes = [1, 1, 128], strides = [1, 1, 1]} : vector<3x3x128xf32> to vector<1x1x128xf32>
    %48 = vector.shape_cast %47 : vector<1x1x128xf32> to vector<128xf32>
    %49 = vector.shape_cast %48 : vector<128xf32> to vector<1x1x128xf32>
    %50 = vector.broadcast %49 : vector<1x1x128xf32> to vector<8x16x128xf32>
    %51 = arith.mulf %46, %50 : vector<8x16x128xf32>
    %52 = arith.addf %45, %51 : vector<8x16x128xf32>
    %53 = vector.extract_strided_slice %1 {offsets = [2, 1, 0], sizes = [8, 16, 128], strides = [1, 1, 1]} : vector<10x18x128xf32> to vector<8x16x128xf32>
    %54 = vector.extract_strided_slice %2 {offsets = [2, 1, 0], sizes = [1, 1, 128], strides = [1, 1, 1]} : vector<3x3x128xf32> to vector<1x1x128xf32>
    %55 = vector.shape_cast %54 : vector<1x1x128xf32> to vector<128xf32>
    %56 = vector.shape_cast %55 : vector<128xf32> to vector<1x1x128xf32>
    %57 = vector.broadcast %56 : vector<1x1x128xf32> to vector<8x16x128xf32>
    %58 = arith.mulf %53, %57 : vector<8x16x128xf32>
    %59 = arith.addf %52, %58 : vector<8x16x128xf32>
    %60 = vector.extract_strided_slice %1 {offsets = [2, 2, 0], sizes = [8, 16, 128], strides = [1, 1, 1]} : vector<10x18x128xf32> to vector<8x16x128xf32>
    %61 = vector.extract_strided_slice %2 {offsets = [2, 2, 0], sizes = [1, 1, 128], strides = [1, 1, 1]} : vector<3x3x128xf32> to vector<1x1x128xf32>
    %62 = vector.shape_cast %61 : vector<1x1x128xf32> to vector<128xf32>
    %63 = vector.shape_cast %62 : vector<128xf32> to vector<1x1x128xf32>
    %64 = vector.broadcast %63 : vector<1x1x128xf32> to vector<8x16x128xf32>
    %65 = arith.mulf %60, %64 : vector<8x16x128xf32>
    %66 = arith.addf %59, %65 : vector<8x16x128xf32>
    %c0_6 = arith.constant 0 : index
    %c0_7 = arith.constant 0 : index
    %67 = vector.load %arg3[%c0_6, %c0_7] : memref<1x128xf32, #tpu.memory_space<vmem>>, vector<1x128xf32>
    %68 = vector.shape_cast %67 : vector<1x128xf32> to vector<128xf32>
    %69 = vector.shape_cast %68 : vector<128xf32> to vector<1x1x128xf32>
    %70 = vector.broadcast %69 : vector<1x1x128xf32> to vector<8x16x128xf32>
    %71 = arith.addf %66, %70 : vector<8x16x128xf32>
    %cst_8 = arith.constant 0.000000e+00 : f32
    %72 = vector.broadcast %cst_8 : f32 to vector<8x16x128xf32>
    %73 = arith.maximumf %71, %72 : vector<8x16x128xf32>
    %74 = vector.shape_cast %73 : vector<8x16x128xf32> to vector<128x128xf32>
    %75 = arith.truncf %74 : vector<128x128xf32> to vector<128x128xbf16>
    %c0_9 = arith.constant 0 : index
    %c0_10 = arith.constant 0 : index
    %76 = vector.load %arg4[%c0_9, %c0_10] : memref<128x128xbf16, #tpu.memory_space<vmem>>, vector<128x128xbf16>
    %cst_11 = arith.constant dense<0.000000e+00> : vector<128x128xf32>
    %77 = tpu.matmul %75, %76, %cst_11 {dimension_numbers = #tpu.dot_dimension_numbers<[1], [0], [0], [1], [0, 0, 1, 1], [], []>} : vector<128x128xbf16>, vector<128x128xbf16>, vector<128x128xf32> -> vector<128x128xf32>
    %c0_12 = arith.constant 0 : index
    %c0_13 = arith.constant 0 : index
    %78 = vector.load %arg5[%c0_12, %c0_13] : memref<1x128xf32, #tpu.memory_space<vmem>>, vector<1x128xf32>
    %79 = vector.shape_cast %78 : vector<1x128xf32> to vector<128xf32>
    %80 = vector.shape_cast %79 : vector<128xf32> to vector<1x128xf32>
    %81 = vector.broadcast %80 : vector<1x128xf32> to vector<128x128xf32>
    %82 = arith.addf %77, %81 : vector<128x128xf32>
    %83 = vector.shape_cast %82 : vector<128x128xf32> to vector<1x8x16x128xf32>
    %c0_14 = arith.constant 0 : index
    %c0_15 = arith.constant 0 : index
    %c0_16 = arith.constant 0 : index
    %c0_17 = arith.constant 0 : index
    %84 = vector.load %arg6[%c0_14, %c0_15, %c0_16, %c0_17] : memref<1x8x16x128xf32, #tpu.memory_space<vmem>>, vector<1x8x16x128xf32>
    tpu.vector_store %arg6[%c0_14, %c0_15, %c0_16, %c0_17], %83 {strides = array<i32>} : memref<1x8x16x128xf32, #tpu.memory_space<vmem>>, vector<1x8x16x128xf32>,
    return
  }
  func.func @transform_0(%arg0: i32) -> (i32, i32, i32, i32) {
    %c0_i32 = arith.constant 0 : i32
    %c0_i32_0 = arith.constant 0 : i32
    %c0_i32_1 = arith.constant 0 : i32
    %c0_i32_2 = arith.constant 0 : i32
    return %arg0, %c0_i32, %c0_i32_0, %c0_i32_1 : i32, i32, i32, i32
  }
  func.func @transform_1(%arg0: i32) -> (i32, i32, i32) {
    %c0_i32 = arith.constant 0 : i32
    %c0_i32_0 = arith.constant 0 : i32
    %c0_i32_1 = arith.constant 0 : i32
    %c0_i32_2 = arith.constant 0 : i32
    return %c0_i32, %c0_i32_0, %c0_i32_1 : i32, i32, i32
  }
  func.func @transform_2(%arg0: i32) -> (i32, i32) {
    %c0_i32 = arith.constant 0 : i32
    %c0_i32_0 = arith.constant 0 : i32
    %c0_i32_1 = arith.constant 0 : i32
    return %c0_i32, %c0_i32_0 : i32, i32
  }
  func.func @transform_3(%arg0: i32) -> (i32, i32) {
    %c0_i32 = arith.constant 0 : i32
    %c0_i32_0 = arith.constant 0 : i32
    %c0_i32_1 = arith.constant 0 : i32
    return %c0_i32, %c0_i32_0 : i32, i32
  }
  func.func @transform_4(%arg0: i32) -> (i32, i32) {
    %c0_i32 = arith.constant 0 : i32
    %c0_i32_0 = arith.constant 0 : i32
    %c0_i32_1 = arith.constant 0 : i32
    return %c0_i32, %c0_i32_0 : i32, i32
  }
  func.func @transform_5(%arg0: i32) -> (i32, i32, i32, i32) {
    %c0_i32 = arith.constant 0 : i32
    %c0_i32_0 = arith.constant 0 : i32
    %c0_i32_1 = arith.constant 0 : i32
    %c0_i32_2 = arith.constant 0 : i32
    return %arg0, %c0_i32, %c0_i32_0, %c0_i32_1 : i32, i32, i32, i32
  }
}

</mosaic_0001>

<llo_original>
// kernel: depth_sep_conv2d.1
$region0: #{depth_sep_conv2d.1}
  #allocation0 [shape = 'u32[]', space=smem, size = 0x4, offset = 0x4, fixed_abs, tag = 'smem constant byte address 0x4 - core index']
  #allocation1 [shape = 'u32[72,128]{1,0:T(1,128)}', space=vmem, size = 0x9000, scoped, tag = 'internal scratch']
  %s0 = inlined_call_operand.vmem [shape: f32[4,10,18,128], index: 0, kind: input, shape index: {}]
  %s1 = inlined_call_operand.vmem [shape: f32[3,3,128], index: 1, kind: input, shape index: {}]
  %s2 = inlined_call_operand.vmem [shape: f32[1,128], index: 2, kind: input, shape index: {}]
  %s3 = inlined_call_operand.vmem [shape: bf16[128,128], index: 3, kind: input, shape index: {}]
  %s4 = inlined_call_operand.vmem [shape: f32[1,128], index: 4, kind: input, shape index: {}]
  %s5 = inlined_call_operand.vmem [shape: f32[4,8,16,128], index: 5, kind: output, shape index: {}]
  %s6 = sld [smem:[#allocation0]]
  $region53: #{depth_sep_conv2d.1} parent=0
    _
  %s8 = ssub.s32 1, %s6
  %s9 = scalar_select 0, %s8, %s6
  loop: start=0, step=1, limit=6
  $region2: #{depth_sep_conv2d.1} parent=0 // loop_pre_header
    _
  $region3: #{depth_sep_conv2d.1} parent=0 // loop_header
    %s11 = sphi 0, %s15
    %p12 = scmp.ge.s32.totalorder %s11, 6
    %s21 = sphi 0, %s23
    %s24 = sphi 0, %s21
    %s25 = sphi 0, %s24
    %s41 = sphi 0, %s25
    %s45 = sphi 0, %s45
    %s47 = sphi 0, %s45
    %s48 = sphi 0, %s47
    %s62 = sphi 0, %s48
    %s66 = sphi 0, %s66
    %s68 = sphi 0, %s66
    %s69 = sphi 0, %s68
    %s83 = sphi 0, %s69
    %s87 = sphi 0, %s87
    %s89 = sphi 0, %s87
    %s90 = sphi 0, %s89
    %s104 = sphi 0, %s90
    %s108 = sphi 0, %s108
    %s110 = sphi 0, %s108
    %s111 = sphi 0, %s110
    %s125 = sphi 0, %s111
    %s131 = sphi 0, %s133
    %s134 = sphi 0, %s131
    %s135 = sphi 0, %s134
    %s151 = sphi 0, %s135
  $region4: #{depth_sep_conv2d.1} parent=0 // loop_header_branch
    %14 = sbr.rel (%p12) target = $region8
  $region5: #{depth_sep_conv2d.1} parent=0 // loop_body
    %s16 = ssub.s32 %s11, 1
    %s17 = ssub.s32 %s11, 2
    %s18 = sadd.s32 %s11, 1
    %s19 = ssub.s32 %s11, %s18
    %p20 = scmp.eq.s32.totalorder %s19, 0
    %s22 = sadd.s32 %s21, 1
    %s23 = scalar_select %p20, %s21, %s22
    %p26 = pneg %p20
    %p27 = scmp.eq.s32.totalorder %s11, 3
    %p28 = por %p26, %p27
    %p29 = scmp.ne.s32.totalorder %s21, %s24
    %p30 = scmp.eq.s32.totalorder %s11, 0
    %p31 = por %p29, %p30
    %p32 = scmp.ne.s32.totalorder %s21, %s24
    %p33 = scmp.eq.s32.totalorder %s16, 3
    %p34 = por %p32, %p33
    %p35 = scmp.ne.s32.totalorder %s24, %s25
    %p36 = scmp.eq.s32.totalorder %s16, 0
    %p37 = por %p35, %p36
    %p38 = scmp.ne.s32.totalorder %s24, %s25
    %p39 = scmp.eq.s32.totalorder %s17, 3
    %p40 = por %p38, %p39
    %p42 = scmp.ne.s32.totalorder %s25, %s41
    %p43 = scmp.eq.s32.totalorder %s17, 0
    %p44 = por %p42, %p43
    %s46 = sadd.s32 %s45, 1
    %p49 = scmp.eq.s32.totalorder %s11, 3
    %p50 = scmp.ne.s32.totalorder %s45, %s47
    %p51 = scmp.eq.s32.totalorder %s11, 0
    %p52 = por %p50, %p51
    %p53 = scmp.ne.s32.totalorder %s45, %s47
    %p54 = scmp.eq.s32.totalorder %s16, 3
    %p55 = por %p53, %p54
    %p56 = scmp.ne.s32.totalorder %s47, %s48
    %p57 = scmp.eq.s32.totalorder %s16, 0
    %p58 = por %p56, %p57
    %p59 = scmp.ne.s32.totalorder %s47, %s48
    %p60 = scmp.eq.s32.totalorder %s17, 3
    %p61 = por %p59, %p60
    %p63 = scmp.ne.s32.totalorder %s48, %s62
    %p64 = scmp.eq.s32.totalorder %s17, 0
    %p65 = por %p63, %p64
    %s67 = sadd.s32 %s66, 1
    %p70 = scmp.eq.s32.totalorder %s11, 3
    %p71 = scmp.ne.s32.totalorder %s66, %s68
    %p72 = scmp.eq.s32.totalorder %s11, 0
    %p73 = por %p71, %p72
    %p74 = scmp.ne.s32.totalorder %s66, %s68
    %p75 = scmp.eq.s32.totalorder %s16, 3
    %p76 = por %p74, %p75
    %p77 = scmp.ne.s32.totalorder %s68, %s69
    %p78 = scmp.eq.s32.totalorder %s16, 0
    %p79 = por %p77, %p78
    %p80 = scmp.ne.s32.totalorder %s68, %s69
    %p81 = scmp.eq.s32.totalorder %s17, 3
    %p82 = por %p80, %p81
    %p84 = scmp.ne.s32.totalorder %s69, %s83
    %p85 = scmp.eq.s32.totalorder %s17, 0
    %p86 = por %p84, %p85
    %s88 = sadd.s32 %s87, 1
    %p91 = scmp.eq.s32.totalorder %s11, 3
    %p92 = scmp.ne.s32.totalorder %s87, %s89
    %p93 = scmp.eq.s32.totalorder %s11, 0
    %p94 = por %p92, %p93
    %p95 = scmp.ne.s32.totalorder %s87, %s89
    %p96 = scmp.eq.s32.totalorder %s16, 3
    %p97 = por %p95, %p96
    %p98 = scmp.ne.s32.totalorder %s89, %s90
    %p99 = scmp.eq.s32.totalorder %s16, 0
    %p100 = por %p98, %p99
    %p101 = scmp.ne.s32.totalorder %s89, %s90
    %p102 = scmp.eq.s32.totalorder %s17, 3
    %p103 = por %p101, %p102
    %p105 = scmp.ne.s32.totalorder %s90, %s104
    %p106 = scmp.eq.s32.totalorder %s17, 0
    %p107 = por %p105, %p106
    %s109 = sadd.s32 %s108, 1
    %p112 = scmp.eq.s32.totalorder %s11, 3
    %p113 = scmp.ne.s32.totalorder %s108, %s110
    %p114 = scmp.eq.s32.totalorder %s11, 0
    %p115 = por %p113, %p114
    %p116 = scmp.ne.s32.totalorder %s108, %s110
    %p117 = scmp.eq.s32.totalorder %s16, 3
    %p118 = por %p116, %p117
    %p119 = scmp.ne.s32.totalorder %s110, %s111
    %p120 = scmp.eq.s32.totalorder %s16, 0
    %p121 = por %p119, %p120
    %p122 = scmp.ne.s32.totalorder %s110, %s111
    %p123 = scmp.eq.s32.totalorder %s17, 3
    %p124 = por %p122, %p123
    %p126 = scmp.ne.s32.totalorder %s111, %s125
    %p127 = scmp.eq.s32.totalorder %s17, 0
    %p128 = por %p126, %p127
    %s129 = ssub.s32 %s11, %s18
    %p130 = scmp.eq.s32.totalorder %s129, 0
    %s132 = sadd.s32 %s131, 1
    %s133 = scalar_select %p130, %s131, %s132
    %p136 = pneg %p130
    %p137 = scmp.eq.s32.totalorder %s11, 3
    %p138 = por %p136, %p137
    %p139 = scmp.ne.s32.totalorder %s131, %s134
    %p140 = scmp.eq.s32.totalorder %s11, 0
    %p141 = por %p139, %p140
    %p142 = scmp.ne.s32.totalorder %s131, %s134
    %p143 = scmp.eq.s32.totalorder %s16, 3
    %p144 = por %p142, %p143
    %p145 = scmp.ne.s32.totalorder %s134, %s135
    %p146 = scmp.eq.s32.totalorder %s16, 0
    %p147 = por %p145, %p146
    %p148 = scmp.ne.s32.totalorder %s134, %s135
    %p149 = scmp.eq.s32.totalorder %s17, 3
    %p150 = por %p148, %p149
    %p152 = scmp.ne.s32.totalorder %s135, %s151
    %p153 = scmp.eq.s32.totalorder %s17, 0
    %p154 = por %p152, %p153
    %p155 = scmp.le.s32.totalorder 1, %s11
    %p156 = scmp.lt.s32.totalorder %s11, 5
    %p157 = pnand %p155, %p156
    %p158 = pneg %p157
    // Predicated region
    $region9: #{depth_sep_conv2d.1} parent=5 // pred_check
      _
    $region10: #{depth_sep_conv2d.1} parent=5 // pred_check_branch
      %160 = sbr.rel (%p157) target = $region12
    $region11: #{depth_sep_conv2d.1} parent=5 // pred_region
      %s161 = ssub.s32 %s11, 1
      // Predicated region
      $region13: #{depth_sep_conv2d.1} parent=11 // pred_check
        %p162 = pneg %p58
      $region14: #{depth_sep_conv2d.1} parent=11 // pred_check_branch
        %164 = sbr.rel (%p162) target = $region16
      $region15: #{depth_sep_conv2d.1} parent=11 // pred_region
        _
      $region16: #{depth_sep_conv2d.1} parent=11 // pred_fallthru
        _
      // Predicated region
      $region17: #{depth_sep_conv2d.1} parent=11 // pred_check
        %p165 = pneg %p79
      $region18: #{depth_sep_conv2d.1} parent=11 // pred_check_branch
        %167 = sbr.rel (%p165) target = $region20
      $region19: #{depth_sep_conv2d.1} parent=11 // pred_region
        _
      $region20: #{depth_sep_conv2d.1} parent=11 // pred_fallthru
        _
      // Predicated region
      $region21: #{depth_sep_conv2d.1} parent=11 // pred_check
        %p168 = pneg %p100
      $region22: #{depth_sep_conv2d.1} parent=11 // pred_check_branch
        %170 = sbr.rel (%p168) target = $region24
      $region23: #{depth_sep_conv2d.1} parent=11 // pred_region
        _
      $region24: #{depth_sep_conv2d.1} parent=11 // pred_fallthru
        _
      // Predicated region
      $region25: #{depth_sep_conv2d.1} parent=11 // pred_check
        %p171 = pneg %p121
      $region26: #{depth_sep_conv2d.1} parent=11 // pred_check_branch
        %173 = sbr.rel (%p171) target = $region28
      $region27: #{depth_sep_conv2d.1} parent=11 // pred_region
        _
      $region28: #{depth_sep_conv2d.1} parent=11 // pred_fallthru
        _
    $region12: #{depth_sep_conv2d.1} parent=5 // pred_fallthru
      _
    %p174 = scmp.lt.s32.totalorder %s11, 4
    // Predicated region
    $region29: #{depth_sep_conv2d.1} parent=5 // pred_check
      %p175 = pneg %p174
    $region30: #{depth_sep_conv2d.1} parent=5 // pred_check_branch
      %177 = sbr.rel (%p175) target = $region32
    $region31: #{depth_sep_conv2d.1} parent=5 // pred_region
      // Predicated region
      $region33: #{depth_sep_conv2d.1} parent=31 // pred_check
        %p178 = pneg %p31
      $region34: #{depth_sep_conv2d.1} parent=31 // pred_check_branch
        %180 = sbr.rel (%p178) target = $region36
      $region35: #{depth_sep_conv2d.1} parent=31 // pred_region
        %p181 = scmp.lt.s32.totalorder %s11, 3
        %s182 = scalar_select %p181, %s11, 3
        %s183 = smul.addr %s182, 30
        %s184 = smul.addr %s183, 8
        %s185 = scalar_lea.vmem %s0, %s184
      $region36: #{depth_sep_conv2d.1} parent=31 // pred_fallthru
        _
    $region32: #{depth_sep_conv2d.1} parent=5 // pred_fallthru
      _
    %p186 = scmp.le.s32.totalorder 1, %s11
    %p187 = scmp.lt.s32.totalorder %s11, 5
    %p188 = pnand %p186, %p187
    %p189 = pneg %p188
    // Predicated region
    $region37: #{depth_sep_conv2d.1} parent=5 // pred_check
      _
    $region38: #{depth_sep_conv2d.1} parent=5 // pred_check_branch
      %191 = sbr.rel (%p188) target = $region40
    $region39: #{depth_sep_conv2d.1} parent=5 // pred_region
      %s192 = ssub.s32 %s11, 1
      %p193 = scmp.lt.s32.totalorder %s16, 3
      %s194 = scalar_select %p193, %s16, 3
      %s195 = smul.addr %s194, 30
      %s196 = smul.addr %s195, 8
      %s197 = scalar_lea.vmem %s0, %s196
      %p198 = pneg %p37
      %p199 = pneg %p34
      %p200 = pneg %p58
      %p201 = pneg %p55
      %p202 = pneg %p79
      %p203 = pneg %p76
      %p204 = pneg %p100
      %p205 = pneg %p97
      %p206 = pneg %p121
      %p207 = pneg %p118
      %p208 = pneg %p147
      %p209 = pneg %p144
      %p210 = scmp.lt.s32.totalorder %s16, 3
      %s211 = scalar_select %p210, %s16, 3
      %s212 = smul.addr %s211, 16
      %s213 = smul.addr %s212, 8
      %s214 = scalar_lea.vmem %s5, %s213
      %p215 = scmp.lt.s32.totalorder %s16, 3
      %s216 = scalar_select %p215, %s16, 3
      %s217 = smul.addr %s216, 30
      %s218 = smul.addr %s217, 8
      %s219 = scalar_lea.vmem %s0, %s218
      %p220 = scmp.lt.s32.totalorder %s16, 3
      %s221 = scalar_select %p220, %s16, 3
      %s222 = smul.addr %s221, 16
      %s223 = smul.addr %s222, 8
      %s224 = scalar_lea.vmem %s5, %s223
      %v225 = vld [vmem:[%s219] sm:$0xff]
      %v226 = vld [vmem:[%s219 + $0x8] sm:$0xff]
      %v227 = vld [vmem:[%s219 + $0x10] sm:$0x3]
      %v228 = vld [vmem:[%s219 + $0x18] sm:$0xff]
      %v229 = vld [vmem:[%s219 + $0x20] sm:$0xff]
      %v230 = vld [vmem:[%s219 + $0x28] sm:$0x3]
      %v231 = vld [vmem:[%s219 + $0x30] sm:$0xff]
      %v232 = vld [vmem:[%s219 + $0x38] sm:$0xff]
      %v233 = vld [vmem:[%s219 + $0x40] sm:$0x3]
      %v234 = vld [vmem:[%s219 + $0x48] sm:$0xff]
      %v235 = vld [vmem:[%s219 + $0x50] sm:$0xff]
      %v236 = vld [vmem:[%s219 + $0x58] sm:$0x3]
      %v237 = vld [vmem:[%s219 + $0x60] sm:$0xff]
      %v238 = vld [vmem:[%s219 + $0x68] sm:$0xff]
      %v239 = vld [vmem:[%s219 + $0x70] sm:$0x3]
      %v240 = vld [vmem:[%s219 + $0x78] sm:$0xff]
      %v241 = vld [vmem:[%s219 + $0x80] sm:$0xff]
      %v242 = vld [vmem:[%s219 + $0x88] sm:$0x3]
      %v243 = vld [vmem:[%s219 + $0x90] sm:$0xff]
      %v244 = vld [vmem:[%s219 + $0x98] sm:$0xff]
      %v245 = vld [vmem:[%s219 + $0xa0] sm:$0x3]
      %v246 = vld [vmem:[%s219 + $0xa8] sm:$0xff]
      %v247 = vld [vmem:[%s219 + $0xb0] sm:$0xff]
      %v248 = vld [vmem:[%s219 + $0xb8] sm:$0x3]
      %v249 = vld [vmem:[%s219 + $0xc0] sm:$0xff]
      %v250 = vld [vmem:[%s219 + $0xc8] sm:$0xff]
      %v251 = vld [vmem:[%s219 + $0xd0] sm:$0x3]
      %v252 = vld [vmem:[%s219 + $0xd8] sm:$0xff]
      %v253 = vld [vmem:[%s219 + $0xe0] sm:$0xff]
      %v254 = vld [vmem:[%s219 + $0xe8] sm:$0x3]
      %v255 = vld [vmem:[%s1] sm:$0x7]
      %v256 = vld [vmem:[%s1 + $0x4] sm:$0x7]
      %v257 = vld [vmem:[%s1 + $0x8] sm:$0x7]
      %v258 = vperm.slane %v255, 0
      %v259 = vmul.f32 %v225, %v258
      %v260 = vmul.f32 %v226, %v258
      %v261 = vmul.f32 %v228, %v258
      %v262 = vmul.f32 %v229, %v258
      %v263 = vmul.f32 %v231, %v258
      %v264 = vmul.f32 %v232, %v258
      %v265 = vmul.f32 %v234, %v258
      %v266 = vmul.f32 %v235, %v258
      %v267 = vmul.f32 %v237, %v258
      %v268 = vmul.f32 %v238, %v258
      %v269 = vmul.f32 %v240, %v258
      %v270 = vmul.f32 %v241, %v258
      %v271 = vmul.f32 %v243, %v258
      %v272 = vmul.f32 %v244, %v258
      %v273 = vmul.f32 %v246, %v258
      %v274 = vmul.f32 %v247, %v258
      %v275 = vadd.f32 %v259, 0.0
      %v276 = vadd.f32 %v260, 0.0
      %v277 = vadd.f32 %v261, 0.0
      %v278 = vadd.f32 %v262, 0.0
      %v279 = vadd.f32 %v263, 0.0
      %v280 = vadd.f32 %v264, 0.0
      %v281 = vadd.f32 %v265, 0.0
      %v282 = vadd.f32 %v266, 0.0
      %v283 = vadd.f32 %v267, 0.0
      %v284 = vadd.f32 %v268, 0.0
      %v285 = vadd.f32 %v269, 0.0
      %v286 = vadd.f32 %v270, 0.0
      %v287 = vadd.f32 %v271, 0.0
      %v288 = vadd.f32 %v272, 0.0
      %v289 = vadd.f32 %v273, 0.0
      %v290 = vadd.f32 %v274, 0.0
      %v291 = vperm.slane %v255, 1
      %v292 = vmul.f32 %v225, %v291
      %v293 = vmul.f32 %v226, %v291
      %v294 = vmul.f32 %v227, %v291
      %v295 = vmul.f32 %v228, %v291
      %v296 = vmul.f32 %v229, %v291
      %v297 = vmul.f32 %v230, %v291
      %v298 = vmul.f32 %v231, %v291
      %v299 = vmul.f32 %v232, %v291
      %v300 = vmul.f32 %v233, %v291
      %v301 = vmul.f32 %v234, %v291
      %v302 = vmul.f32 %v235, %v291
      %v303 = vmul.f32 %v236, %v291
      %v304 = vmul.f32 %v237, %v291
      %v305 = vmul.f32 %v238, %v291
      %v306 = vmul.f32 %v239, %v291
      %v307 = vmul.f32 %v240, %v291
      %v308 = vmul.f32 %v241, %v291
      %v309 = vmul.f32 %v242, %v291
      %v310 = vmul.f32 %v243, %v291
      %v311 = vmul.f32 %v244, %v291
      %v312 = vmul.f32 %v245, %v291
      %v313 = vmul.f32 %v246, %v291
      %v314 = vmul.f32 %v247, %v291
      %v315 = vmul.f32 %v248, %v291
      %vm340 = vcmask 1046528
      %v341 = vrot.slane %v292, 1
      %v342 = vrot.slane %v293, 1
      %v343 = vsel %vm340, %v341, %v342
      %v344 = vrot.slane %v294, 1
      %v345 = vsel %vm340, %v342, %v344
      %v346 = vrot.slane %v295, 1
      %v347 = vrot.slane %v296, 1
      %v348 = vsel %vm340, %v346, %v347
      %v349 = vrot.slane %v297, 1
      %v350 = vsel %vm340, %v347, %v349
      %v351 = vrot.slane %v298, 1
      %v352 = vrot.slane %v299, 1
      %v353 = vsel %vm340, %v351, %v352
      %v354 = vrot.slane %v300, 1
      %v355 = vsel %vm340, %v352, %v354
      %v356 = vrot.slane %v301, 1
      %v357 = vrot.slane %v302, 1
      %v358 = vsel %vm340, %v356, %v357
      %v359 = vrot.slane %v303, 1
      %v360 = vsel %vm340, %v357, %v359
      %v361 = vrot.slane %v304, 1
      %v362 = vrot.slane %v305, 1
      %v363 = vsel %vm340, %v361, %v362
      %v364 = vrot.slane %v306, 1
      %v365 = vsel %vm340, %v362, %v364
      %v366 = vrot.slane %v307, 1
      %v367 = vrot.slane %v308, 1
      %v368 = vsel %vm340, %v366, %v367
      %v369 = vrot.slane %v309, 1
      %v370 = vsel %vm340, %v367, %v369
      %v371 = vrot.slane %v310, 1
      %v372 = vrot.slane %v311, 1
      %v373 = vsel %vm340, %v371, %v372
      %v374 = vrot.slane %v312, 1
      %v375 = vsel %vm340, %v372, %v374
      %v376 = vrot.slane %v313, 1
      %v377 = vrot.slane %v314, 1
      %v378 = vsel %vm340, %v376, %v377
      %v379 = vrot.slane %v315, 1
      %v380 = vsel %vm340, %v377, %v379
      %v397 = vadd.f32 %v275, %v343
      %v398 = vadd.f32 %v276, %v345
      %v399 = vadd.f32 %v277, %v348
      %v400 = vadd.f32 %v278, %v350
      %v401 = vadd.f32 %v279, %v353
      %v402 = vadd.f32 %v280, %v355
      %v403 = vadd.f32 %v281, %v358
      %v404 = vadd.f32 %v282, %v360
      %v405 = vadd.f32 %v283, %v363
      %v406 = vadd.f32 %v284, %v365
      %v407 = vadd.f32 %v285, %v368
      %v408 = vadd.f32 %v286, %v370
      %v409 = vadd.f32 %v287, %v373
      %v410 = vadd.f32 %v288, %v375
      %v411 = vadd.f32 %v289, %v378
      %v412 = vadd.f32 %v290, %v380
      %v413 = vperm.slane %v255, 2
      %v414 = vmul.f32 %v225, %v413
      %v415 = vmul.f32 %v226, %v413
      %v416 = vmul.f32 %v227, %v413
      %v417 = vmul.f32 %v228, %v413
      %v418 = vmul.f32 %v229, %v413
      %v419 = vmul.f32 %v230, %v413
      %v420 = vmul.f32 %v231, %v413
      %v421 = vmul.f32 %v232, %v413
      %v422 = vmul.f32 %v233, %v413
      %v423 = vmul.f32 %v234, %v413
      %v424 = vmul.f32 %v235, %v413
      %v425 = vmul.f32 %v236, %v413
      %v426 = vmul.f32 %v237, %v413
      %v427 = vmul.f32 %v238, %v413
      %v428 = vmul.f32 %v239, %v413
      %v429 = vmul.f32 %v240, %v413
      %v430 = vmul.f32 %v241, %v413
      %v431 = vmul.f32 %v242, %v413
      %v432 = vmul.f32 %v243, %v413
      %v433 = vmul.f32 %v244, %v413
      %v434 = vmul.f32 %v245, %v413
      %v435 = vmul.f32 %v246, %v413
      %v436 = vmul.f32 %v247, %v413
      %v437 = vmul.f32 %v248, %v413
      %vm462 = vcmask 1045504
      %v463 = vrot.slane %v414, 2
      %v464 = vrot.slane %v415, 2
      %v465 = vsel %vm462, %v463, %v464
      %v466 = vrot.slane %v416, 2
      %v467 = vsel %vm462, %v464, %v466
      %v468 = vrot.slane %v417, 2
      %v469 = vrot.slane %v418, 2
      %v470 = vsel %vm462, %v468, %v469
      %v471 = vrot.slane %v419, 2
      %v472 = vsel %vm462, %v469, %v471
      %v473 = vrot.slane %v420, 2
      %v474 = vrot.slane %v421, 2
      %v475 = vsel %vm462, %v473, %v474
      %v476 = vrot.slane %v422, 2
      %v477 = vsel %vm462, %v474, %v476
      %v478 = vrot.slane %v423, 2
      %v479 = vrot.slane %v424, 2
      %v480 = vsel %vm462, %v478, %v479
      %v481 = vrot.slane %v425, 2
      %v482 = vsel %vm462, %v479, %v481
      %v483 = vrot.slane %v426, 2
      %v484 = vrot.slane %v427, 2
      %v485 = vsel %vm462, %v483, %v484
      %v486 = vrot.slane %v428, 2
      %v487 = vsel %vm462, %v484, %v486
      %v488 = vrot.slane %v429, 2
      %v489 = vrot.slane %v430, 2
      %v490 = vsel %vm462, %v488, %v489
      %v491 = vrot.slane %v431, 2
      %v492 = vsel %vm462, %v489, %v491
      %v493 = vrot.slane %v432, 2
      %v494 = vrot.slane %v433, 2
      %v495 = vsel %vm462, %v493, %v494
      %v496 = vrot.slane %v434, 2
      %v497 = vsel %vm462, %v494, %v496
      %v498 = vrot.slane %v435, 2
      %v499 = vrot.slane %v436, 2
      %v500 = vsel %vm462, %v498, %v499
      %v501 = vrot.slane %v437, 2
      %v502 = vsel %vm462, %v499, %v501
      %v519 = vadd.f32 %v397, %v465
      %v520 = vadd.f32 %v398, %v467
      %v521 = vadd.f32 %v399, %v470
      %v522 = vadd.f32 %v400, %v472
      %v523 = vadd.f32 %v401, %v475
      %v524 = vadd.f32 %v402, %v477
      %v525 = vadd.f32 %v403, %v480
      %v526 = vadd.f32 %v404, %v482
      %v527 = vadd.f32 %v405, %v485
      %v528 = vadd.f32 %v406, %v487
      %v529 = vadd.f32 %v407, %v490
      %v530 = vadd.f32 %v408, %v492
      %v531 = vadd.f32 %v409, %v495
      %v532 = vadd.f32 %v410, %v497
      %v533 = vadd.f32 %v411, %v500
      %v534 = vadd.f32 %v412, %v502
      %v535 = vperm.slane %v256, 0
      %v536 = vmul.f32 %v228, %v535
      %v537 = vmul.f32 %v229, %v535
      %v538 = vmul.f32 %v231, %v535
      %v539 = vmul.f32 %v232, %v535
      %v540 = vmul.f32 %v234, %v535
      %v541 = vmul.f32 %v235, %v535
      %v542 = vmul.f32 %v237, %v535
      %v543 = vmul.f32 %v238, %v535
      %v544 = vmul.f32 %v240, %v535
      %v545 = vmul.f32 %v241, %v535
      %v546 = vmul.f32 %v243, %v535
      %v547 = vmul.f32 %v244, %v535
      %v548 = vmul.f32 %v246, %v535
      %v549 = vmul.f32 %v247, %v535
      %v550 = vmul.f32 %v249, %v535
      %v551 = vmul.f32 %v250, %v535
      %v552 = vadd.f32 %v519, %v536
      %v553 = vadd.f32 %v520, %v537
      %v554 = vadd.f32 %v521, %v538
      %v555 = vadd.f32 %v522, %v539
      %v556 = vadd.f32 %v523, %v540
      %v557 = vadd.f32 %v524, %v541
      %v558 = vadd.f32 %v525, %v542
      %v559 = vadd.f32 %v526, %v543
      %v560 = vadd.f32 %v527, %v544
      %v561 = vadd.f32 %v528, %v545
      %v562 = vadd.f32 %v529, %v546
      %v563 = vadd.f32 %v530, %v547
      %v564 = vadd.f32 %v531, %v548
      %v565 = vadd.f32 %v532, %v549
      %v566 = vadd.f32 %v533, %v550
      %v567 = vadd.f32 %v534, %v551
      %v568 = vperm.slane %v256, 1
      %v569 = vmul.f32 %v228, %v568
      %v570 = vmul.f32 %v229, %v568
      %v571 = vmul.f32 %v230, %v568
      %v572 = vmul.f32 %v231, %v568
      %v573 = vmul.f32 %v232, %v568
      %v574 = vmul.f32 %v233, %v568
      %v575 = vmul.f32 %v234, %v568
      %v576 = vmul.f32 %v235, %v568
      %v577 = vmul.f32 %v236, %v568
      %v578 = vmul.f32 %v237, %v568
      %v579 = vmul.f32 %v238, %v568
      %v580 = vmul.f32 %v239, %v568
      %v581 = vmul.f32 %v240, %v568
      %v582 = vmul.f32 %v241, %v568
      %v583 = vmul.f32 %v242, %v568
      %v584 = vmul.f32 %v243, %v568
      %v585 = vmul.f32 %v244, %v568
      %v586 = vmul.f32 %v245, %v568
      %v587 = vmul.f32 %v246, %v568
      %v588 = vmul.f32 %v247, %v568
      %v589 = vmul.f32 %v248, %v568
      %v590 = vmul.f32 %v249, %v568
      %v591 = vmul.f32 %v250, %v568
      %v592 = vmul.f32 %v251, %v568
      %v617 = vrot.slane %v569, 1
      %v618 = vrot.slane %v570, 1
      %v619 = vsel %vm340, %v617, %v618
      %v620 = vrot.slane %v571, 1
      %v621 = vsel %vm340, %v618, %v620
      %v622 = vrot.slane %v572, 1
      %v623 = vrot.slane %v573, 1
      %v624 = vsel %vm340, %v622, %v623
      %v625 = vrot.slane %v574, 1
      %v626 = vsel %vm340, %v623, %v625
      %v627 = vrot.slane %v575, 1
      %v628 = vrot.slane %v576, 1
      %v629 = vsel %vm340, %v627, %v628
      %v630 = vrot.slane %v577, 1
      %v631 = vsel %vm340, %v628, %v630
      %v632 = vrot.slane %v578, 1
      %v633 = vrot.slane %v579, 1
      %v634 = vsel %vm340, %v632, %v633
      %v635 = vrot.slane %v580, 1
      %v636 = vsel %vm340, %v633, %v635
      %v637 = vrot.slane %v581, 1
      %v638 = vrot.slane %v582, 1
      %v639 = vsel %vm340, %v637, %v638
      %v640 = vrot.slane %v583, 1
      %v641 = vsel %vm340, %v638, %v640
      %v642 = vrot.slane %v584, 1
      %v643 = vrot.slane %v585, 1
      %v644 = vsel %vm340, %v642, %v643
      %v645 = vrot.slane %v586, 1
      %v646 = vsel %vm340, %v643, %v645
      %v647 = vrot.slane %v587, 1
      %v648 = vrot.slane %v588, 1
      %v649 = vsel %vm340, %v647, %v648
      %v650 = vrot.slane %v589, 1
      %v651 = vsel %vm340, %v648, %v650
      %v652 = vrot.slane %v590, 1
      %v653 = vrot.slane %v591, 1
      %v654 = vsel %vm340, %v652, %v653
      %v655 = vrot.slane %v592, 1
      %v656 = vsel %vm340, %v653, %v655
      %v673 = vadd.f32 %v552, %v619
      %v674 = vadd.f32 %v553, %v621
      %v675 = vadd.f32 %v554, %v624
      %v676 = vadd.f32 %v555, %v626
      %v677 = vadd.f32 %v556, %v629
      %v678 = vadd.f32 %v557, %v631
      %v679 = vadd.f32 %v558, %v634
      %v680 = vadd.f32 %v559, %v636
      %v681 = vadd.f32 %v560, %v639
      %v682 = vadd.f32 %v561, %v641
      %v683 = vadd.f32 %v562, %v644
      %v684 = vadd.f32 %v563, %v646
      %v685 = vadd.f32 %v564, %v649
      %v686 = vadd.f32 %v565, %v651
      %v687 = vadd.f32 %v566, %v654
      %v688 = vadd.f32 %v567, %v656
      %v689 = vperm.slane %v256, 2
      %v690 = vmul.f32 %v228, %v689
      %v691 = vmul.f32 %v229, %v689
      %v692 = vmul.f32 %v230, %v689
      %v693 = vmul.f32 %v231, %v689
      %v694 = vmul.f32 %v232, %v689
      %v695 = vmul.f32 %v233, %v689
      %v696 = vmul.f32 %v234, %v689
      %v697 = vmul.f32 %v235, %v689
      %v698 = vmul.f32 %v236, %v689
      %v699 = vmul.f32 %v237, %v689
      %v700 = vmul.f32 %v238, %v689
      %v701 = vmul.f32 %v239, %v689
      %v702 = vmul.f32 %v240, %v689
      %v703 = vmul.f32 %v241, %v689
      %v704 = vmul.f32 %v242, %v689
      %v705 = vmul.f32 %v243, %v689
      %v706 = vmul.f32 %v244, %v689
      %v707 = vmul.f32 %v245, %v689
      %v708 = vmul.f32 %v246, %v689
      %v709 = vmul.f32 %v247, %v689
      %v710 = vmul.f32 %v248, %v689
      %v711 = vmul.f32 %v249, %v689
      %v712 = vmul.f32 %v250, %v689
      %v713 = vmul.f32 %v251, %v689
      %v738 = vrot.slane %v690, 2
      %v739 = vrot.slane %v691, 2
      %v740 = vsel %vm462, %v738, %v739
      %v741 = vrot.slane %v692, 2
      %v742 = vsel %vm462, %v739, %v741
      %v743 = vrot.slane %v693, 2
      %v744 = vrot.slane %v694, 2
      %v745 = vsel %vm462, %v743, %v744
      %v746 = vrot.slane %v695, 2
      %v747 = vsel %vm462, %v744, %v746
      %v748 = vrot.slane %v696, 2
      %v749 = vrot.slane %v697, 2
      %v750 = vsel %vm462, %v748, %v749
      %v751 = vrot.slane %v698, 2
      %v752 = vsel %vm462, %v749, %v751
      %v753 = vrot.slane %v699, 2
      %v754 = vrot.slane %v700, 2
      %v755 = vsel %vm462, %v753, %v754
      %v756 = vrot.slane %v701, 2
      %v757 = vsel %vm462, %v754, %v756
      %v758 = vrot.slane %v702, 2
      %v759 = vrot.slane %v703, 2
      %v760 = vsel %vm462, %v758, %v759
      %v761 = vrot.slane %v704, 2
      %v762 = vsel %vm462, %v759, %v761
      %v763 = vrot.slane %v705, 2
      %v764 = vrot.slane %v706, 2
      %v765 = vsel %vm462, %v763, %v764
      %v766 = vrot.slane %v707, 2
      %v767 = vsel %vm462, %v764, %v766
      %v768 = vrot.slane %v708, 2
      %v769 = vrot.slane %v709, 2
      %v770 = vsel %vm462, %v768, %v769
      %v771 = vrot.slane %v710, 2
      %v772 = vsel %vm462, %v769, %v771
      %v773 = vrot.slane %v711, 2
      %v774 = vrot.slane %v712, 2
      %v775 = vsel %vm462, %v773, %v774
      %v776 = vrot.slane %v713, 2
      %v777 = vsel %vm462, %v774, %v776
      %v794 = vadd.f32 %v673, %v740
      %v795 = vadd.f32 %v674, %v742
      %v796 = vadd.f32 %v675, %v745
      %v797 = vadd.f32 %v676, %v747
      %v798 = vadd.f32 %v677, %v750
      %v799 = vadd.f32 %v678, %v752
      %v800 = vadd.f32 %v679, %v755
      %v801 = vadd.f32 %v680, %v757
      %v802 = vadd.f32 %v681, %v760
      %v803 = vadd.f32 %v682, %v762
      %v804 = vadd.f32 %v683, %v765
      %v805 = vadd.f32 %v684, %v767
      %v806 = vadd.f32 %v685, %v770
      %v807 = vadd.f32 %v686, %v772
      %v808 = vadd.f32 %v687, %v775
      %v809 = vadd.f32 %v688, %v777
      %v810 = vperm.slane %v257, 0
      %v811 = vmul.f32 %v231, %v810
      %v812 = vmul.f32 %v232, %v810
      %v813 = vmul.f32 %v234, %v810
      %v814 = vmul.f32 %v235, %v810
      %v815 = vmul.f32 %v237, %v810
      %v816 = vmul.f32 %v238, %v810
      %v817 = vmul.f32 %v240, %v810
      %v818 = vmul.f32 %v241, %v810
      %v819 = vmul.f32 %v243, %v810
      %v820 = vmul.f32 %v244, %v810
      %v821 = vmul.f32 %v246, %v810
      %v822 = vmul.f32 %v247, %v810
      %v823 = vmul.f32 %v249, %v810
      %v824 = vmul.f32 %v250, %v810
      %v825 = vmul.f32 %v252, %v810
      %v826 = vmul.f32 %v253, %v810
      %v827 = vadd.f32 %v794, %v811
      %v828 = vadd.f32 %v795, %v812
      %v829 = vadd.f32 %v796, %v813
      %v830 = vadd.f32 %v797, %v814
      %v831 = vadd.f32 %v798, %v815
      %v832 = vadd.f32 %v799, %v816
      %v833 = vadd.f32 %v800, %v817
      %v834 = vadd.f32 %v801, %v818
      %v835 = vadd.f32 %v802, %v819
      %v836 = vadd.f32 %v803, %v820
      %v837 = vadd.f32 %v804, %v821
      %v838 = vadd.f32 %v805, %v822
      %v839 = vadd.f32 %v806, %v823
      %v840 = vadd.f32 %v807, %v824
      %v841 = vadd.f32 %v808, %v825
      %v842 = vadd.f32 %v809, %v826
      %v843 = vperm.slane %v257, 1
      %v844 = vmul.f32 %v231, %v843
      %v845 = vmul.f32 %v232, %v843
      %v846 = vmul.f32 %v233, %v843
      %v847 = vmul.f32 %v234, %v843
      %v848 = vmul.f32 %v235, %v843
      %v849 = vmul.f32 %v236, %v843
      %v850 = vmul.f32 %v237, %v843
      %v851 = vmul.f32 %v238, %v843
      %v852 = vmul.f32 %v239, %v843
      %v853 = vmul.f32 %v240, %v843
      %v854 = vmul.f32 %v241, %v843
      %v855 = vmul.f32 %v242, %v843
      %v856 = vmul.f32 %v243, %v843
      %v857 = vmul.f32 %v244, %v843
      %v858 = vmul.f32 %v245, %v843
      %v859 = vmul.f32 %v246, %v843
      %v860 = vmul.f32 %v247, %v843
      %v861 = vmul.f32 %v248, %v843
      %v862 = vmul.f32 %v249, %v843
      %v863 = vmul.f32 %v250, %v843
      %v864 = vmul.f32 %v251, %v843
      %v865 = vmul.f32 %v252, %v843
      %v866 = vmul.f32 %v253, %v843
      %v867 = vmul.f32 %v254, %v843
      %v892 = vrot.slane %v844, 1
      %v893 = vrot.slane %v845, 1
      %v894 = vsel %vm340, %v892, %v893
      %v895 = vrot.slane %v846, 1
      %v896 = vsel %vm340, %v893, %v895
      %v897 = vrot.slane %v847, 1
      %v898 = vrot.slane %v848, 1
      %v899 = vsel %vm340, %v897, %v898
      %v900 = vrot.slane %v849, 1
      %v901 = vsel %vm340, %v898, %v900
      %v902 = vrot.slane %v850, 1
      %v903 = vrot.slane %v851, 1
      %v904 = vsel %vm340, %v902, %v903
      %v905 = vrot.slane %v852, 1
      %v906 = vsel %vm340, %v903, %v905
      %v907 = vrot.slane %v853, 1
      %v908 = vrot.slane %v854, 1
      %v909 = vsel %vm340, %v907, %v908
      %v910 = vrot.slane %v855, 1
      %v911 = vsel %vm340, %v908, %v910
      %v912 = vrot.slane %v856, 1
      %v913 = vrot.slane %v857, 1
      %v914 = vsel %vm340, %v912, %v913
      %v915 = vrot.slane %v858, 1
      %v916 = vsel %vm340, %v913, %v915
      %v917 = vrot.slane %v859, 1
      %v918 = vrot.slane %v860, 1
      %v919 = vsel %vm340, %v917, %v918
      %v920 = vrot.slane %v861, 1
      %v921 = vsel %vm340, %v918, %v920
      %v922 = vrot.slane %v862, 1
      %v923 = vrot.slane %v863, 1
      %v924 = vsel %vm340, %v922, %v923
      %v925 = vrot.slane %v864, 1
      %v926 = vsel %vm340, %v923, %v925
      %v927 = vrot.slane %v865, 1
      %v928 = vrot.slane %v866, 1
      %v929 = vsel %vm340, %v927, %v928
      %v930 = vrot.slane %v867, 1
      %v931 = vsel %vm340, %v928, %v930
      %v948 = vadd.f32 %v827, %v894
      %v949 = vadd.f32 %v828, %v896
      %v950 = vadd.f32 %v829, %v899
      %v951 = vadd.f32 %v830, %v901
      %v952 = vadd.f32 %v831, %v904
      %v953 = vadd.f32 %v832, %v906
      %v954 = vadd.f32 %v833, %v909
      %v955 = vadd.f32 %v834, %v911
      %v956 = vadd.f32 %v835, %v914
      %v957 = vadd.f32 %v836, %v916
      %v958 = vadd.f32 %v837, %v919
      %v959 = vadd.f32 %v838, %v921
      %v960 = vadd.f32 %v839, %v924
      %v961 = vadd.f32 %v840, %v926
      %v962 = vadd.f32 %v841, %v929
      %v963 = vadd.f32 %v842, %v931
      %v964 = vperm.slane %v257, 2
      %v965 = vmul.f32 %v231, %v964
      %v966 = vmul.f32 %v232, %v964
      %v967 = vmul.f32 %v233, %v964
      %v968 = vmul.f32 %v234, %v964
      %v969 = vmul.f32 %v235, %v964
      %v970 = vmul.f32 %v236, %v964
      %v971 = vmul.f32 %v237, %v964
      %v972 = vmul.f32 %v238, %v964
      %v973 = vmul.f32 %v239, %v964
      %v974 = vmul.f32 %v240, %v964
      %v975 = vmul.f32 %v241, %v964
      %v976 = vmul.f32 %v242, %v964
      %v977 = vmul.f32 %v243, %v964
      %v978 = vmul.f32 %v244, %v964
      %v979 = vmul.f32 %v245, %v964
      %v980 = vmul.f32 %v246, %v964
      %v981 = vmul.f32 %v247, %v964
      %v982 = vmul.f32 %v248, %v964
      %v983 = vmul.f32 %v249, %v964
      %v984 = vmul.f32 %v250, %v964
      %v985 = vmul.f32 %v251, %v964
      %v986 = vmul.f32 %v252, %v964
      %v987 = vmul.f32 %v253, %v964
      %v988 = vmul.f32 %v254, %v964
      %v1013 = vrot.slane %v965, 2
      %v1014 = vrot.slane %v966, 2
      %v1015 = vsel %vm462, %v1013, %v1014
      %v1016 = vrot.slane %v967, 2
      %v1017 = vsel %vm462, %v1014, %v1016
      %v1018 = vrot.slane %v968, 2
      %v1019 = vrot.slane %v969, 2
      %v1020 = vsel %vm462, %v1018, %v1019
      %v1021 = vrot.slane %v970, 2
      %v1022 = vsel %vm462, %v1019, %v1021
      %v1023 = vrot.slane %v971, 2
      %v1024 = vrot.slane %v972, 2
      %v1025 = vsel %vm462, %v1023, %v1024
      %v1026 = vrot.slane %v973, 2
      %v1027 = vsel %vm462, %v1024, %v1026
      %v1028 = vrot.slane %v974, 2
      %v1029 = vrot.slane %v975, 2
      %v1030 = vsel %vm462, %v1028, %v1029
      %v1031 = vrot.slane %v976, 2
      %v1032 = vsel %vm462, %v1029, %v1031
      %v1033 = vrot.slane %v977, 2
      %v1034 = vrot.slane %v978, 2
      %v1035 = vsel %vm462, %v1033, %v1034
      %v1036 = vrot.slane %v979, 2
      %v1037 = vsel %vm462, %v1034, %v1036
      %v1038 = vrot.slane %v980, 2
      %v1039 = vrot.slane %v981, 2
      %v1040 = vsel %vm462, %v1038, %v1039
      %v1041 = vrot.slane %v982, 2
      %v1042 = vsel %vm462, %v1039, %v1041
      %v1043 = vrot.slane %v983, 2
      %v1044 = vrot.slane %v984, 2
      %v1045 = vsel %vm462, %v1043, %v1044
      %v1046 = vrot.slane %v985, 2
      %v1047 = vsel %vm462, %v1044, %v1046
      %v1048 = vrot.slane %v986, 2
      %v1049 = vrot.slane %v987, 2
      %v1050 = vsel %vm462, %v1048, %v1049
      %v1051 = vrot.slane %v988, 2
      %v1052 = vsel %vm462, %v1049, %v1051
      %v1069 = vadd.f32 %v948, %v1015
      %v1070 = vadd.f32 %v949, %v1017
      %v1071 = vadd.f32 %v950, %v1020
      %v1072 = vadd.f32 %v951, %v1022
      %v1073 = vadd.f32 %v952, %v1025
      %v1074 = vadd.f32 %v953, %v1027
      %v1075 = vadd.f32 %v954, %v1030
      %v1076 = vadd.f32 %v955, %v1032
      %v1077 = vadd.f32 %v956, %v1035
      %v1078 = vadd.f32 %v957, %v1037
      %v1079 = vadd.f32 %v958, %v1040
      %v1080 = vadd.f32 %v959, %v1042
      %v1081 = vadd.f32 %v960, %v1045
      %v1082 = vadd.f32 %v961, %v1047
      %v1083 = vadd.f32 %v962, %v1050
      %v1084 = vadd.f32 %v963, %v1052
      %v1085 = vld [vmem:[%s2] sm:$0x1]
      %v1087 = vperm.slane %v1085, 0
      %v1089 = vadd.f32 %v1069, %v1087
      %v1090 = vadd.f32 %v1070, %v1087
      %v1091 = vadd.f32 %v1071, %v1087
      %v1092 = vadd.f32 %v1072, %v1087
      %v1093 = vadd.f32 %v1073, %v1087
      %v1094 = vadd.f32 %v1074, %v1087
      %v1095 = vadd.f32 %v1075, %v1087
      %v1096 = vadd.f32 %v1076, %v1087
      %v1097 = vadd.f32 %v1077, %v1087
      %v1098 = vadd.f32 %v1078, %v1087
      %v1099 = vadd.f32 %v1079, %v1087
      %v1100 = vadd.f32 %v1080, %v1087
      %v1101 = vadd.f32 %v1081, %v1087
      %v1102 = vadd.f32 %v1082, %v1087
      %v1103 = vadd.f32 %v1083, %v1087
      %v1104 = vadd.f32 %v1084, %v1087
      %v1105 = vmax.f32 %v1089, 0.0
      %v1106 = vmax.f32 %v1090, 0.0
      %v1107 = vmax.f32 %v1091, 0.0
      %v1108 = vmax.f32 %v1092, 0.0
      %v1109 = vmax.f32 %v1093, 0.0
      %v1110 = vmax.f32 %v1094, 0.0
      %v1111 = vmax.f32 %v1095, 0.0
      %v1112 = vmax.f32 %v1096, 0.0
      %v1113 = vmax.f32 %v1097, 0.0
      %v1114 = vmax.f32 %v1098, 0.0
      %v1115 = vmax.f32 %v1099, 0.0
      %v1116 = vmax.f32 %v1100, 0.0
      %v1117 = vmax.f32 %v1101, 0.0
      %v1118 = vmax.f32 %v1102, 0.0
      %v1119 = vmax.f32 %v1103, 0.0
      %v1120 = vmax.f32 %v1104, 0.0
      %v1121 = vpack.c.bf16 %v1106, %v1105
      %v1122 = vpack.c.bf16 %v1108, %v1107
      %v1123 = vpack.c.bf16 %v1110, %v1109
      %v1124 = vpack.c.bf16 %v1112, %v1111
      %v1125 = vpack.c.bf16 %v1114, %v1113
      %v1126 = vpack.c.bf16 %v1116, %v1115
      %v1127 = vpack.c.bf16 %v1118, %v1117
      %v1128 = vpack.c.bf16 %v1120, %v1119
      %v1129 = vld [vmem:[%s3] sm:$0xf]
      %v1130 = vld [vmem:[%s3 + $0x4] sm:$0xf]
      %v1131 = vld [vmem:[%s3 + $0x8] sm:$0xf]
      %v1132 = vld [vmem:[%s3 + $0xc] sm:$0xf]
      %v1133 = vld [vmem:[%s3 + $0x10] sm:$0xf]
      %v1134 = vld [vmem:[%s3 + $0x14] sm:$0xf]
      %v1135 = vld [vmem:[%s3 + $0x18] sm:$0xf]
      %v1136 = vld [vmem:[%s3 + $0x1c] sm:$0xf]
      %v1137 = vld [vmem:[%s3 + $0x20] sm:$0xf]
      %v1138 = vld [vmem:[%s3 + $0x24] sm:$0xf]
      %v1139 = vld [vmem:[%s3 + $0x28] sm:$0xf]
      %v1140 = vld [vmem:[%s3 + $0x2c] sm:$0xf]
      %v1141 = vld [vmem:[%s3 + $0x30] sm:$0xf]
      %v1142 = vld [vmem:[%s3 + $0x34] sm:$0xf]
      %v1143 = vld [vmem:[%s3 + $0x38] sm:$0xf]
      %v1144 = vld [vmem:[%s3 + $0x3c] sm:$0xf]
      %v1145 = vld [vmem:[%s4] sm:$0x1]
      %v1147 = vperm.slane %v1145, 0
      %v1165 = vunpack.c.l.b16 %v1129
      %v1166 = vunpack.c.l.b16 %v1130
      %v1167 = vunpack.c.l.b16 %v1131
      %v1168 = vunpack.c.l.b16 %v1132
      %v1169 = vunpack.c.l.b16 %v1133
      %v1170 = vunpack.c.l.b16 %v1134
      %v1171 = vunpack.c.l.b16 %v1135
      %v1172 = vunpack.c.l.b16 %v1136
      %v1173 = vunpack.c.l.b16 %v1137
      %v1174 = vunpack.c.l.b16 %v1138
      %v1175 = vunpack.c.l.b16 %v1139
      %v1176 = vunpack.c.l.b16 %v1140
      %v1177 = vunpack.c.l.b16 %v1141
      %v1178 = vunpack.c.l.b16 %v1142
      %v1179 = vunpack.c.l.b16 %v1143
      %v1180 = vunpack.c.l.b16 %v1144
      %v1181 = vpack.c.b16 %v1166, %v1165
      %v1182 = vpack.c.b16 %v1168, %v1167
      %v1183 = vpack.c.b16 %v1170, %v1169
      %v1184 = vpack.c.b16 %v1172, %v1171
      %v1185 = vpack.c.b16 %v1174, %v1173
      %v1186 = vpack.c.b16 %v1176, %v1175
      %v1187 = vpack.c.b16 %v1178, %v1177
      %v1188 = vpack.c.b16 %v1180, %v1179
      %1197 = vmatpush.bf16.msra.mxu0 %v1188
      %1198 = vmatpush.bf16.msra.mxu0 %v1187
      %1199 = vmatpush.bf16.msra.mxu0 %v1186
      %1200 = vmatpush.bf16.msra.mxu0 %v1185
      %1201 = vmatpush.bf16.msra.mxu0 %v1184
      %1202 = vmatpush.bf16.msra.mxu0 %v1183
      %1203 = vmatpush.bf16.msra.mxu0 %v1182
      %1204 = vmatpush.bf16.msra.mxu0 %v1181
      %1205 = vmatmul.bf16.gmra.mxu0 %v1121
      %v1206 = vpop.f32.mrf.mxu0
      %v1207 = vadd.f32 %v1147, %v1206
      %v1208 = vpop.f32.mrf.mxu0
      %v1209 = vadd.f32 %v1147, %v1208
      %1210 = vmatmul.bf16.gmra.mxu0 %v1122
      %v1211 = vpop.f32.mrf.mxu0
      %v1212 = vadd.f32 %v1147, %v1211
      %v1213 = vpop.f32.mrf.mxu0
      %v1214 = vadd.f32 %v1147, %v1213
      %1215 = vmatmul.bf16.gmra.mxu0 %v1123
      %v1216 = vpop.f32.mrf.mxu0
      %v1217 = vadd.f32 %v1147, %v1216
      %v1218 = vpop.f32.mrf.mxu0
      %v1219 = vadd.f32 %v1147, %v1218
      %1220 = vmatmul.bf16.gmra.mxu0 %v1124
      %v1221 = vpop.f32.mrf.mxu0
      %v1222 = vadd.f32 %v1147, %v1221
      %v1223 = vpop.f32.mrf.mxu0
      %v1224 = vadd.f32 %v1147, %v1223
      %1225 = vmatmul.bf16.gmra.mxu0 %v1125
      %v1226 = vpop.f32.mrf.mxu0
      %v1227 = vadd.f32 %v1147, %v1226
      %v1228 = vpop.f32.mrf.mxu0
      %v1229 = vadd.f32 %v1147, %v1228
      %1230 = vmatmul.bf16.gmra.mxu0 %v1126
      %v1231 = vpop.f32.mrf.mxu0
      %v1232 = vadd.f32 %v1147, %v1231
      %v1233 = vpop.f32.mrf.mxu0
      %v1234 = vadd.f32 %v1147, %v1233
      %1235 = vmatmul.bf16.gmra.mxu0 %v1127
      %v1236 = vpop.f32.mrf.mxu0
      %v1237 = vadd.f32 %v1147, %v1236
      %v1238 = vpop.f32.mrf.mxu0
      %v1239 = vadd.f32 %v1147, %v1238
      %1240 = vmatmul.bf16.gmra.mxu0 %v1128
      %v1241 = vpop.f32.mrf.mxu0
      %v1242 = vadd.f32 %v1147, %v1241
      %v1243 = vpop.f32.mrf.mxu0
      %v1244 = vadd.f32 %v1147, %v1243
      %1245 = vdwg.mxu0
      %1246 = vst [vmem:[%s224] sm:$0xff] %v1207
      %1247 = vst [vmem:[%s224 + $0x8] sm:$0xff] %v1209
      %1248 = vst [vmem:[%s224 + $0x10] sm:$0xff] %v1212
      %1249 = vst [vmem:[%s224 + $0x18] sm:$0xff] %v1214
      %1250 = vst [vmem:[%s224 + $0x20] sm:$0xff] %v1217
      %1251 = vst [vmem:[%s224 + $0x28] sm:$0xff] %v1219
      %1252 = vst [vmem:[%s224 + $0x30] sm:$0xff] %v1222
      %1253 = vst [vmem:[%s224 + $0x38] sm:$0xff] %v1224
      %1254 = vst [vmem:[%s224 + $0x40] sm:$0xff] %v1227
      %1255 = vst [vmem:[%s224 + $0x48] sm:$0xff] %v1229
      %1256 = vst [vmem:[%s224 + $0x50] sm:$0xff] %v1232
      %1257 = vst [vmem:[%s224 + $0x58] sm:$0xff] %v1234
      %1258 = vst [vmem:[%s224 + $0x60] sm:$0xff] %v1237
      %1259 = vst [vmem:[%s224 + $0x68] sm:$0xff] %v1239
      %1260 = vst [vmem:[%s224 + $0x70] sm:$0xff] %v1242
      %1261 = vst [vmem:[%s224 + $0x78] sm:$0xff] %v1244
      %p1262 = scmp.lt.s32.totalorder %s16, 3
      %s1263 = scalar_select %p1262, %s16, 3
      %s1264 = smul.addr %s1263, 16
      %s1265 = smul.addr %s1264, 8
      %s1266 = scalar_lea.vmem %s5, %s1265
      // Predicated region
      $region41: #{depth_sep_conv2d.1} parent=39 // pred_check
        %p1267 = pneg %p144
      $region42: #{depth_sep_conv2d.1} parent=39 // pred_check_branch
        %1269 = sbr.rel (%p1267) target = $region44
      $region43: #{depth_sep_conv2d.1} parent=39 // pred_region
        _
      $region44: #{depth_sep_conv2d.1} parent=39 // pred_fallthru
        _
    $region40: #{depth_sep_conv2d.1} parent=5 // pred_fallthru
      _
    %p1270 = scmp.le.s32.totalorder 2, %s11
    // Predicated region
    $region45: #{depth_sep_conv2d.1} parent=5 // pred_check
      %p1271 = pneg %p1270
    $region46: #{depth_sep_conv2d.1} parent=5 // pred_check_branch
      %1273 = sbr.rel (%p1271) target = $region48
    $region47: #{depth_sep_conv2d.1} parent=5 // pred_region
      %s1274 = ssub.s32 %s11, 2
      // Predicated region
      $region49: #{depth_sep_conv2d.1} parent=47 // pred_check
        %p1275 = pneg %p150
      $region50: #{depth_sep_conv2d.1} parent=47 // pred_check_branch
        %1277 = sbr.rel (%p1275) target = $region52
      $region51: #{depth_sep_conv2d.1} parent=47 // pred_region
        %p1278 = scmp.lt.s32.totalorder %s17, 3
        %s1279 = scalar_select %p1278, %s17, 3
        %s1280 = smul.addr %s1279, 16
        %s1281 = smul.addr %s1280, 8
        %s1282 = scalar_lea.vmem %s5, %s1281
      $region52: #{depth_sep_conv2d.1} parent=47 // pred_fallthru
        _
    $region48: #{depth_sep_conv2d.1} parent=5 // pred_fallthru
      _
  $region6: #{depth_sep_conv2d.1} parent=0 // loop_footer
    %s15 = sadd.s32 1, %s11
  $region7: #{depth_sep_conv2d.1} parent=0 // loop_footer_branch
    %10 = sbr.rel target = $region3
  $region8: #{depth_sep_conv2d.1} parent=0 // loop_exit
    _

</llo_original>
